<compile_context>
chip_gen: v5e
topology: v5e:2x2
jax: 0.10.0
libtpu: 0.0.40
codegen_flags: <defaults>
</compile_context>

<pallas_src>
import jax
import jax.numpy as jnp
from jax.experimental import pallas as pl
from jax.experimental.pallas import tpu as pltpu


def _causconv_kernel(x_ref, w_ref, b_ref, o_ref):
    # x_ref: (K*Cin, m_tile)  bf16  -- im2col columns for one batch item / tile
    # w_ref: (Cout, K*Cin)    bf16  -- whole folded-tap weight, resident in VMEM
    # b_ref: (Cout, 1)        f32   -- resident in VMEM
    # o_ref: (Cout, m_tile)   output dtype
    acc = jnp.dot(w_ref[...], x_ref[...], preferred_element_type=jnp.float32)
    o_ref[...] = (acc + b_ref[...]).astype(o_ref.dtype)


def caus_conv3d(x, weight, bias, *, m_tile=None, compute_dtype=jnp.bfloat16):
    """Causal Conv3d: Conv3d(padding=(kt-1, 0, 0)) then [..., :T, :, :].

    x:      (N, Cin, T, H, W)   NCDHW (PyTorch layout)
    weight: (Cout, Cin, kt, kh, kw)
    bias:   (Cout,)
    returns (N, Cout, T, Ho, Wo)  with Ho = H - kh + 1, Wo = W - kw + 1
    """
    N, Cin, T, H, W = x.shape
    Cout, Cin2, kt, kh, kw = weight.shape
    assert Cin == Cin2
    pad = kt - 1
    Ho, Wo = H - kh + 1, W - kw + 1
    K = kt * kh * kw
    KC = K * Cin
    L = T * Ho * Wo

    # ---- layout glue: causal left pad in time + im2col with the tap axis folded
    # into the contraction dim.  Columns ordered (t, ho, wo); contraction rows
    # ordered (dt, dh, dw, cin) to match the reshaped weight below.
    x_pad = jnp.pad(x, ((0, 0), (0, 0), (pad, 0), (0, 0), (0, 0)))
    taps = []
    for dt in range(kt):
        for dh in range(kh):
            for dw in range(kw):
                taps.append(x_pad[:, :, dt:dt + T, dh:dh + Ho, dw:dw + Wo])
    x_taps = jnp.stack(taps, axis=1)                        # (N, K, Cin, T, Ho, Wo)
    x_taps = x_taps.reshape(N, KC, L).astype(compute_dtype)
    # TODO(synk): the kt-fold part of this im2col duplication could be removed by
    # expressing the time taps as per-frame column offsets in the BlockSpec.

    w2 = jnp.transpose(weight, (0, 2, 3, 4, 1)).reshape(Cout, KC).astype(compute_dtype)
    b2 = bias.reshape(Cout, 1).astype(jnp.float32)

    # ---- tile selection: big lane-dense column tiles (multiple of 128); pad the
    # column axis up to a tile multiple instead of requiring an exact divisor.
    if m_tile is None:
        m_tile = min(pl.cdiv(L, 128) * 128, 4096)
    m_tile = max(128, (m_tile // 128) * 128)
    L_pad = pl.cdiv(L, m_tile) * m_tile
    if L_pad != L:
        x_taps = jnp.pad(x_taps, ((0, 0), (0, 0), (0, L_pad - L)))

    itemsize = jnp.dtype(compute_dtype).itemsize
    vmem_need = (2 * KC * m_tile * itemsize            # double-buffered X tile
                 + 2 * Cout * m_tile * 4               # double-buffered out tile
                 + Cout * KC * itemsize + Cout * 4)    # resident weight + bias
    vmem_limit = int(min(48 << 20, max(32 << 20, 2 * vmem_need + (2 << 20))))

    grid = (N, L_pad // m_tile)
    out = pl.pallas_call(
        _causconv_kernel,
        out_shape=jax.ShapeDtypeStruct((N, Cout, L_pad), x.dtype),
        grid=grid,
        in_specs=[
            pl.BlockSpec((None, KC, m_tile), lambda n, m: (n, 0, m)),
            pl.BlockSpec((Cout, KC), lambda n, m: (0, 0)),   # constant -> DMA'd once
            pl.BlockSpec((Cout, 1), lambda n, m: (0, 0)),    # constant -> DMA'd once
        ],
        out_specs=pl.BlockSpec((None, Cout, m_tile), lambda n, m: (n, 0, m)),
        compiler_params=pltpu.CompilerParams(
            dimension_semantics=("parallel", "parallel"),
            vmem_limit_bytes=vmem_limit),
    )(x_taps, w2, b2)

    out = out[:, :, :L].reshape(N, Cout, T, Ho, Wo)          # already NCDHW
    return out


if __name__ == "__main__":
    key = jax.random.PRNGKey(0)
    k1, k2, k3 = jax.random.split(key, 3)

    # small shapes consistent with the module's forward
    N, Cin, Cout = 2, 4, 8
    T, H, W = 8, 16, 16
    kt, kh, kw = 3, 3, 3

    x = jax.random.normal(k1, (N, Cin, T, H, W), jnp.float32)
    fan_in = Cin * kt * kh * kw
    bound = 1.0 / (fan_in ** 0.5)
    weight = jax.random.uniform(k2, (Cout, Cin, kt, kh, kw), jnp.float32,
                                minval=-bound, maxval=bound)
    bias = jax.random.uniform(k3, (Cout,), jnp.float32,
                              minval=-bound, maxval=bound)

    out = jax.jit(caus_conv3d)(x, weight, bias)
    out = jax.block_until_ready(out)

    # reference: PyTorch CausConv3d semantics via lax.conv + causal slice
    pad = kt - 1
    ref = jax.lax.conv_general_dilated(
        x, weight, window_strides=(1, 1, 1),
        padding=((pad, pad), (0, 0), (0, 0)),
        dimension_numbers=("NCDHW", "OIDHW", "NCDHW"))
    ref = ref[:, :, :T] + bias[None, :, None, None, None]   # robust for kt == 1 too

    assert out.shape == ref.shape, (out.shape, ref.shape)
    # bf16 inputs with f32 accumulation -> slightly looser tolerance vs f32 ref
    assert jnp.allclose(out, ref, atol=3e-2, rtol=3e-2), "mismatch vs reference conv"
    print("KERNEL_OK")
</pallas_src>

<mosaic_0001>
module attributes {stable_mosaic.version = 11 : i64} {
  func.func @_causconv_kernel(%arg0: i32, %arg1: i32, %arg2: memref<1x108x1664xbf16, #tpu.memory_space<vmem>>, %arg3: memref<8x108xbf16, #tpu.memory_space<vmem>>, %arg4: memref<8x1xf32, #tpu.memory_space<vmem>>, %arg5: memref<1x8x1664xf32, #tpu.memory_space<vmem>>) attributes {dimension_semantics = [#tpu.dimension_semantics<parallel>, #tpu.dimension_semantics<parallel>], iteration_bounds = array<i64: 2, 1>, scalar_prefetch = 0 : i64, scratch_operands = 0 : i64, tpu.core_type = #tpu.core_type<tc>, window_params = [{transform_indices = @transform_0, window_bounds = array<i64: 1, 108, 1664>}, {pipeline_mode = #tpu.pipeline_mode<synchronous>, transform_indices = @transform_1, window_bounds = array<i64: 8, 108>}, {pipeline_mode = #tpu.pipeline_mode<synchronous>, transform_indices = @transform_2, window_bounds = array<i64: 8, 1>}, {transform_indices = @transform_3, window_bounds = array<i64: 1, 8, 1664>}]} {
    %c0 = arith.constant 0 : index
    %c0_0 = arith.constant 0 : index
    %0 = vector.load %arg3[%c0, %c0_0] : memref<8x108xbf16, #tpu.memory_space<vmem>>, vector<8x108xbf16>
    %c0_1 = arith.constant 0 : index
    %c0_2 = arith.constant 0 : index
    %c0_3 = arith.constant 0 : index
    %1 = vector.load %arg2[%c0_1, %c0_2, %c0_3] : memref<1x108x1664xbf16, #tpu.memory_space<vmem>>, vector<1x108x1664xbf16>
    %2 = vector.shape_cast %1 : vector<1x108x1664xbf16> to vector<108x1664xbf16>
    %cst = arith.constant dense<0.000000e+00> : vector<8x1664xf32>
    %3 = tpu.matmul %0, %2, %cst {dimension_numbers = #tpu.dot_dimension_numbers<[1], [0], [0], [1], [0, 0, 1, 1], [], []>} : vector<8x108xbf16>, vector<108x1664xbf16>, vector<8x1664xf32> -> vector<8x1664xf32>
    %c0_4 = arith.constant 0 : index
    %c0_5 = arith.constant 0 : index
    %4 = vector.load %arg4[%c0_4, %c0_5] : memref<8x1xf32, #tpu.memory_space<vmem>>, vector<8x1xf32>
    %5 = vector.broadcast %4 : vector<8x1xf32> to vector<8x1664xf32>
    %6 = arith.addf %3, %5 : vector<8x1664xf32>
    %c0_6 = arith.constant 0 : index
    %c0_7 = arith.constant 0 : index
    %c0_8 = arith.constant 0 : index
    %7 = vector.load %arg5[%c0_6, %c0_7, %c0_8] : memref<1x8x1664xf32, #tpu.memory_space<vmem>>, vector<1x8x1664xf32>
    %8 = vector.shape_cast %7 : vector<1x8x1664xf32> to vector<8x1664xf32>
    %9 = vector.shape_cast %6 : vector<8x1664xf32> to vector<1x8x1664xf32>
    tpu.vector_store %arg5[%c0_6, %c0_7, %c0_8], %9 {strides = array<i32>} : memref<1x8x1664xf32, #tpu.memory_space<vmem>>, vector<1x8x1664xf32>,
    return
  }
  func.func @transform_0(%arg0: i32, %arg1: i32) -> (i32, i32, i32) {
    %c0_i32 = arith.constant 0 : i32
    %c0_i32_0 = arith.constant 0 : i32
    return %arg0, %c0_i32, %arg1 : i32, i32, i32
  }
  func.func @transform_1(%arg0: i32, %arg1: i32) -> (i32, i32) {
    %c0_i32 = arith.constant 0 : i32
    %c0_i32_0 = arith.constant 0 : i32
    %c0_i32_1 = arith.constant 0 : i32
    return %c0_i32, %c0_i32_0 : i32, i32
  }
  func.func @transform_2(%arg0: i32, %arg1: i32) -> (i32, i32) {
    %c0_i32 = arith.constant 0 : i32
    %c0_i32_0 = arith.constant 0 : i32
    %c0_i32_1 = arith.constant 0 : i32
    return %c0_i32, %c0_i32_0 : i32, i32
  }
  func.func @transform_3(%arg0: i32, %arg1: i32) -> (i32, i32, i32) {
    %c0_i32 = arith.constant 0 : i32
    %c0_i32_0 = arith.constant 0 : i32
    return %arg0, %c0_i32, %arg1 : i32, i32, i32
  }
}

</mosaic_0001>

<llo_original>
// kernel: caus_conv3d.1
$region0: #{caus_conv3d.1}
  #allocation0 [shape = 'u32[]', space=smem, size = 0x4, offset = 0x4, fixed_abs, tag = 'smem constant byte address 0x4 - core index']
  #allocation1 [shape = 'u32[72,128]{1,0:T(1,128)}', space=vmem, size = 0x9000, scoped, tag = 'internal scratch']
  %s0 = inlined_call_operand.vmem [shape: bf16[2,108,1664], index: 0, kind: input, shape index: {}]
  %s1 = inlined_call_operand.vmem [shape: bf16[8,108], index: 1, kind: input, shape index: {}]
  %s2 = inlined_call_operand.vmem [shape: f32[8,1], index: 2, kind: input, shape index: {}]
  %s3 = inlined_call_operand.vmem [shape: f32[2,8,1664], index: 3, kind: output, shape index: {}]
  %s4 = sld [smem:[#allocation0]]
  $region45: #{caus_conv3d.1} parent=0
    _
  %s6 = ssub.s32 1, %s4
  %s7 = scalar_select 0, %s6, %s4
  loop: start=0, step=1, limit=4
  $region2: #{caus_conv3d.1} parent=0 // loop_pre_header
    _
  $region3: #{caus_conv3d.1} parent=0 // loop_header
    %s9 = sphi 0, %s13
    %p10 = scmp.ge.s32.totalorder %s9, 4
    %s16 = sphi 0, %s28
    %s17 = sphi 0, %s24
    %s18 = sphi 0, %s16
    %s19 = sphi 0, %s17
    %s20 = sphi 0, %s18
    %s21 = sphi 0, %s19
    %s33 = sphi 0, %s35
    %s36 = sphi 0, %s33
    %s37 = sphi 0, %s36
    %s53 = sphi 0, %s37
    %s57 = sphi 0, %s57
    %s59 = sphi 0, %s57
    %s60 = sphi 0, %s59
    %s74 = sphi 0, %s60
    %s78 = sphi 0, %s78
    %s80 = sphi 0, %s78
    %s81 = sphi 0, %s80
    %s95 = sphi 0, %s81
    %s103 = sphi 0, %s105
    %s106 = sphi 0, %s103
    %s107 = sphi 0, %s106
    %s123 = sphi 0, %s107
  $region4: #{caus_conv3d.1} parent=0 // loop_header_branch
    %12 = sbr.rel (%p10) target = $region8
  $region5: #{caus_conv3d.1} parent=0 // loop_body
    %s14 = ssub.s32 %s9, 1
    %s15 = ssub.s32 %s9, 2
    %s22 = sadd.s32 1, %s17
    %p23 = scmp.ge.s32.totalorder %s22, 1
    %s24 = scalar_select %p23, 0, %s22
    %s25 = sadd.s32 1, %s16
    %s26 = scalar_select %p23, %s25, %s16
    %p27 = scmp.ge.s32.totalorder %s26, 2
    %s28 = scalar_select %p27, 0, %s26
    %s29 = ssub.s32 %s16, %s28
    %s30 = ssub.s32 %s17, %s24
    %s31 = sor.u32 %s29, %s30
    %p32 = scmp.eq.s32.totalorder %s31, 0
    %s34 = sadd.s32 %s33, 1
    %s35 = scalar_select %p32, %s33, %s34
    %p38 = pneg %p32
    %p39 = scmp.eq.s32.totalorder %s9, 1
    %p40 = por %p38, %p39
    %p41 = scmp.ne.s32.totalorder %s33, %s36
    %p42 = scmp.eq.s32.totalorder %s9, 0
    %p43 = por %p41, %p42
    %p44 = scmp.ne.s32.totalorder %s33, %s36
    %p45 = scmp.eq.s32.totalorder %s14, 1
    %p46 = por %p44, %p45
    %p47 = scmp.ne.s32.totalorder %s36, %s37
    %p48 = scmp.eq.s32.totalorder %s14, 0
    %p49 = por %p47, %p48
    %p50 = scmp.ne.s32.totalorder %s36, %s37
    %p51 = scmp.eq.s32.totalorder %s15, 1
    %p52 = por %p50, %p51
    %p54 = scmp.ne.s32.totalorder %s37, %s53
    %p55 = scmp.eq.s32.totalorder %s15, 0
    %p56 = por %p54, %p55
    %s58 = sadd.s32 %s57, 1
    %p61 = scmp.eq.s32.totalorder %s9, 1
    %p62 = scmp.ne.s32.totalorder %s57, %s59
    %p63 = scmp.eq.s32.totalorder %s9, 0
    %p64 = por %p62, %p63
    %p65 = scmp.ne.s32.totalorder %s57, %s59
    %p66 = scmp.eq.s32.totalorder %s14, 1
    %p67 = por %p65, %p66
    %p68 = scmp.ne.s32.totalorder %s59, %s60
    %p69 = scmp.eq.s32.totalorder %s14, 0
    %p70 = por %p68, %p69
    %p71 = scmp.ne.s32.totalorder %s59, %s60
    %p72 = scmp.eq.s32.totalorder %s15, 1
    %p73 = por %p71, %p72
    %p75 = scmp.ne.s32.totalorder %s60, %s74
    %p76 = scmp.eq.s32.totalorder %s15, 0
    %p77 = por %p75, %p76
    %s79 = sadd.s32 %s78, 1
    %p82 = scmp.eq.s32.totalorder %s9, 1
    %p83 = scmp.ne.s32.totalorder %s78, %s80
    %p84 = scmp.eq.s32.totalorder %s9, 0
    %p85 = por %p83, %p84
    %p86 = scmp.ne.s32.totalorder %s78, %s80
    %p87 = scmp.eq.s32.totalorder %s14, 1
    %p88 = por %p86, %p87
    %p89 = scmp.ne.s32.totalorder %s80, %s81
    %p90 = scmp.eq.s32.totalorder %s14, 0
    %p91 = por %p89, %p90
    %p92 = scmp.ne.s32.totalorder %s80, %s81
    %p93 = scmp.eq.s32.totalorder %s15, 1
    %p94 = por %p92, %p93
    %p96 = scmp.ne.s32.totalorder %s81, %s95
    %p97 = scmp.eq.s32.totalorder %s15, 0
    %p98 = por %p96, %p97
    %s99 = ssub.s32 %s16, %s28
    %s100 = ssub.s32 %s17, %s24
    %s101 = sor.u32 %s99, %s100
    %p102 = scmp.eq.s32.totalorder %s101, 0
    %s104 = sadd.s32 %s103, 1
    %s105 = scalar_select %p102, %s103, %s104
    %p108 = pneg %p102
    %p109 = scmp.eq.s32.totalorder %s9, 1
    %p110 = por %p108, %p109
    %p111 = scmp.ne.s32.totalorder %s103, %s106
    %p112 = scmp.eq.s32.totalorder %s9, 0
    %p113 = por %p111, %p112
    %p114 = scmp.ne.s32.totalorder %s103, %s106
    %p115 = scmp.eq.s32.totalorder %s14, 1
    %p116 = por %p114, %p115
    %p117 = scmp.ne.s32.totalorder %s106, %s107
    %p118 = scmp.eq.s32.totalorder %s14, 0
    %p119 = por %p117, %p118
    %p120 = scmp.ne.s32.totalorder %s106, %s107
    %p121 = scmp.eq.s32.totalorder %s15, 1
    %p122 = por %p120, %p121
    %p124 = scmp.ne.s32.totalorder %s107, %s123
    %p125 = scmp.eq.s32.totalorder %s15, 0
    %p126 = por %p124, %p125
    %p127 = scmp.le.s32.totalorder 1, %s9
    %p128 = scmp.lt.s32.totalorder %s9, 3
    %p129 = pnand %p127, %p128
    %p130 = pneg %p129
    // Predicated region
    $region9: #{caus_conv3d.1} parent=5 // pred_check
      _
    $region10: #{caus_conv3d.1} parent=5 // pred_check_branch
      %132 = sbr.rel (%p129) target = $region12
    $region11: #{caus_conv3d.1} parent=5 // pred_region
      %s133 = ssub.s32 %s9, 1
      // Predicated region
      $region13: #{caus_conv3d.1} parent=11 // pred_check
        %p134 = pneg %p70
      $region14: #{caus_conv3d.1} parent=11 // pred_check_branch
        %136 = sbr.rel (%p134) target = $region16
      $region15: #{caus_conv3d.1} parent=11 // pred_region
        _
      $region16: #{caus_conv3d.1} parent=11 // pred_fallthru
        _
      // Predicated region
      $region17: #{caus_conv3d.1} parent=11 // pred_check
        %p137 = pneg %p91
      $region18: #{caus_conv3d.1} parent=11 // pred_check_branch
        %139 = sbr.rel (%p137) target = $region20
      $region19: #{caus_conv3d.1} parent=11 // pred_region
        _
      $region20: #{caus_conv3d.1} parent=11 // pred_fallthru
        _
    $region12: #{caus_conv3d.1} parent=5 // pred_fallthru
      _
    %p140 = scmp.lt.s32.totalorder %s9, 2
    // Predicated region
    $region21: #{caus_conv3d.1} parent=5 // pred_check
      %p141 = pneg %p140
    $region22: #{caus_conv3d.1} parent=5 // pred_check_branch
      %143 = sbr.rel (%p141) target = $region24
    $region23: #{caus_conv3d.1} parent=5 // pred_region
      // Predicated region
      $region25: #{caus_conv3d.1} parent=23 // pred_check
        %p144 = pneg %p43
      $region26: #{caus_conv3d.1} parent=23 // pred_check_branch
        %146 = sbr.rel (%p144) target = $region28
      $region27: #{caus_conv3d.1} parent=23 // pred_region
        %s147 = smul.u32 13, %s17
        %p148 = scmp.lt.s32.totalorder %s16, 1
        %s149 = scalar_select %p148, %s16, 1
        %p150 = scmp.lt.s32.totalorder %s147, 12
        %s151 = scalar_select %p150, %s147, 12
        %s152 = smul.addr %s149, 182
        %s153 = sadd.s32 %s151, %s152
        %s154 = smul.addr %s153, 4
        %s155 = scalar_lea.vmem %s0, %s154
        %s156 = smul.u32 13, %s17
      $region28: #{caus_conv3d.1} parent=23 // pred_fallthru
        _
    $region24: #{caus_conv3d.1} parent=5 // pred_fallthru
      _
    %p157 = scmp.le.s32.totalorder 1, %s9
    %p158 = scmp.lt.s32.totalorder %s9, 3
    %p159 = pnand %p157, %p158
    %p160 = pneg %p159
    // Predicated region
    $region29: #{caus_conv3d.1} parent=5 // pred_check
      _
    $region30: #{caus_conv3d.1} parent=5 // pred_check_branch
      %162 = sbr.rel (%p159) target = $region32
    $region31: #{caus_conv3d.1} parent=5 // pred_region
      %s163 = ssub.s32 %s9, 1
      %s164 = smul.u32 13, %s19
      %p165 = scmp.lt.s32.totalorder %s18, 1
      %s166 = scalar_select %p165, %s18, 1
      %p167 = scmp.lt.s32.totalorder %s164, 12
      %s168 = scalar_select %p167, %s164, 12
      %s169 = smul.addr %s166, 182
      %s170 = sadd.s32 %s168, %s169
      %s171 = smul.addr %s170, 4
      %s172 = scalar_lea.vmem %s0, %s171
      %p173 = pneg %p49
      %p174 = pneg %p46
      %p175 = pneg %p70
      %p176 = pneg %p67
      %p177 = pneg %p91
      %p178 = pneg %p88
      %p179 = pneg %p119
      %p180 = pneg %p116
      %s181 = smul.u32 13, %s19
      %p182 = scmp.lt.s32.totalorder %s18, 1
      %s183 = scalar_select %p182, %s18, 1
      %p184 = scmp.lt.s32.totalorder %s181, 12
      %s185 = scalar_select %p184, %s181, 12
      %s186 = smul.addr %s183, 13
      %s187 = sadd.s32 %s185, %s186
      %s188 = smul.addr %s187, 8
      %s189 = scalar_lea.vmem %s3, %s188
      %s190 = smul.u32 13, %s19
      %p191 = scmp.lt.s32.totalorder %s18, 1
      %s192 = scalar_select %p191, %s18, 1
      %p193 = scmp.lt.s32.totalorder %s190, 12
      %s194 = scalar_select %p193, %s190, 12
      %s195 = smul.addr %s192, 182
      %s196 = sadd.s32 %s194, %s195
      %s197 = smul.addr %s196, 4
      %s198 = scalar_lea.vmem %s0, %s197
      %s199 = smul.u32 13, %s19
      %s200 = smul.u32 13, %s19
      %p201 = scmp.lt.s32.totalorder %s18, 1
      %s202 = scalar_select %p201, %s18, 1
      %p203 = scmp.lt.s32.totalorder %s200, 12
      %s204 = scalar_select %p203, %s200, 12
      %s205 = smul.addr %s202, 13
      %s206 = sadd.s32 %s204, %s205
      %s207 = smul.addr %s206, 8
      %s208 = scalar_lea.vmem %s3, %s207
      %s209 = smul.u32 13, %s19
      %v211 = vld [vmem:[%s1] sm:$0xf]
      %v212 = vld [vmem:[%s198] sm:$0xff]
      %v213 = vld [vmem:[%s198 + $0x8] sm:$0xff]
      %v214 = vld [vmem:[%s198 + $0x10] sm:$0xff]
      %v215 = vld [vmem:[%s198 + $0x18] sm:$0xff]
      %v216 = vld [vmem:[%s198 + $0x20] sm:$0xff]
      %v217 = vld [vmem:[%s198 + $0x28] sm:$0xff]
      %v218 = vld [vmem:[%s198 + $0x30] sm:$0xf]
      %v219 = vld [vmem:[%s198 + $0x34] sm:$0xff]
      %v220 = vld [vmem:[%s198 + $0x3c] sm:$0xff]
      %v221 = vld [vmem:[%s198 + $0x44] sm:$0xff]
      %v222 = vld [vmem:[%s198 + $0x4c] sm:$0xff]
      %v223 = vld [vmem:[%s198 + $0x54] sm:$0xff]
      %v224 = vld [vmem:[%s198 + $0x5c] sm:$0xff]
      %v225 = vld [vmem:[%s198 + $0x64] sm:$0xf]
      %v226 = vld [vmem:[%s198 + $0x68] sm:$0xff]
      %v227 = vld [vmem:[%s198 + $0x70] sm:$0xff]
      %v228 = vld [vmem:[%s198 + $0x78] sm:$0xff]
      %v229 = vld [vmem:[%s198 + $0x80] sm:$0xff]
      %v230 = vld [vmem:[%s198 + $0x88] sm:$0xff]
      %v231 = vld [vmem:[%s198 + $0x90] sm:$0xff]
      %v232 = vld [vmem:[%s198 + $0x98] sm:$0xf]
      %v233 = vld [vmem:[%s198 + $0x9c] sm:$0xff]
      %v234 = vld [vmem:[%s198 + $0xa4] sm:$0xff]
      %v235 = vld [vmem:[%s198 + $0xac] sm:$0xff]
      %v236 = vld [vmem:[%s198 + $0xb4] sm:$0xff]
      %v237 = vld [vmem:[%s198 + $0xbc] sm:$0xff]
      %v238 = vld [vmem:[%s198 + $0xc4] sm:$0xff]
      %v239 = vld [vmem:[%s198 + $0xcc] sm:$0xf]
      %v240 = vld [vmem:[%s198 + $0xd0] sm:$0xff]
      %v241 = vld [vmem:[%s198 + $0xd8] sm:$0xff]
      %v242 = vld [vmem:[%s198 + $0xe0] sm:$0xff]
      %v243 = vld [vmem:[%s198 + $0xe8] sm:$0xff]
      %v244 = vld [vmem:[%s198 + $0xf0] sm:$0xff]
      %v245 = vld [vmem:[%s198 + $0xf8] sm:$0xff]
      %v246 = vld [vmem:[%s198 + $0x100] sm:$0xf]
      %v247 = vld [vmem:[%s198 + $0x104] sm:$0xff]
      %v248 = vld [vmem:[%s198 + $0x10c] sm:$0xff]
      %v249 = vld [vmem:[%s198 + $0x114] sm:$0xff]
      %v250 = vld [vmem:[%s198 + $0x11c] sm:$0xff]
      %v251 = vld [vmem:[%s198 + $0x124] sm:$0xff]
      %v252 = vld [vmem:[%s198 + $0x12c] sm:$0xff]
      %v253 = vld [vmem:[%s198 + $0x134] sm:$0xf]
      %v254 = vld [vmem:[%s198 + $0x138] sm:$0xff]
      %v255 = vld [vmem:[%s198 + $0x140] sm:$0xff]
      %v256 = vld [vmem:[%s198 + $0x148] sm:$0xff]
      %v257 = vld [vmem:[%s198 + $0x150] sm:$0xff]
      %v258 = vld [vmem:[%s198 + $0x158] sm:$0xff]
      %v259 = vld [vmem:[%s198 + $0x160] sm:$0xff]
      %v260 = vld [vmem:[%s198 + $0x168] sm:$0xf]
      %v261 = vld [vmem:[%s198 + $0x16c] sm:$0xff]
      %v262 = vld [vmem:[%s198 + $0x174] sm:$0xff]
      %v263 = vld [vmem:[%s198 + $0x17c] sm:$0xff]
      %v264 = vld [vmem:[%s198 + $0x184] sm:$0xff]
      %v265 = vld [vmem:[%s198 + $0x18c] sm:$0xff]
      %v266 = vld [vmem:[%s198 + $0x194] sm:$0xff]
      %v267 = vld [vmem:[%s198 + $0x19c] sm:$0xf]
      %v268 = vld [vmem:[%s198 + $0x1a0] sm:$0xff]
      %v269 = vld [vmem:[%s198 + $0x1a8] sm:$0xff]
      %v270 = vld [vmem:[%s198 + $0x1b0] sm:$0xff]
      %v271 = vld [vmem:[%s198 + $0x1b8] sm:$0xff]
      %v272 = vld [vmem:[%s198 + $0x1c0] sm:$0xff]
      %v273 = vld [vmem:[%s198 + $0x1c8] sm:$0xff]
      %v274 = vld [vmem:[%s198 + $0x1d0] sm:$0xf]
      %v275 = vld [vmem:[%s198 + $0x1d4] sm:$0xff]
      %v276 = vld [vmem:[%s198 + $0x1dc] sm:$0xff]
      %v277 = vld [vmem:[%s198 + $0x1e4] sm:$0xff]
      %v278 = vld [vmem:[%s198 + $0x1ec] sm:$0xff]
      %v279 = vld [vmem:[%s198 + $0x1f4] sm:$0xff]
      %v280 = vld [vmem:[%s198 + $0x1fc] sm:$0xff]
      %v281 = vld [vmem:[%s198 + $0x204] sm:$0xf]
      %v282 = vld [vmem:[%s198 + $0x208] sm:$0xff]
      %v283 = vld [vmem:[%s198 + $0x210] sm:$0xff]
      %v284 = vld [vmem:[%s198 + $0x218] sm:$0xff]
      %v285 = vld [vmem:[%s198 + $0x220] sm:$0xff]
      %v286 = vld [vmem:[%s198 + $0x228] sm:$0xff]
      %v287 = vld [vmem:[%s198 + $0x230] sm:$0xff]
      %v288 = vld [vmem:[%s198 + $0x238] sm:$0xf]
      %v289 = vld [vmem:[%s198 + $0x23c] sm:$0xff]
      %v290 = vld [vmem:[%s198 + $0x244] sm:$0xff]
      %v291 = vld [vmem:[%s198 + $0x24c] sm:$0xff]
      %v292 = vld [vmem:[%s198 + $0x254] sm:$0xff]
      %v293 = vld [vmem:[%s198 + $0x25c] sm:$0xff]
      %v294 = vld [vmem:[%s198 + $0x264] sm:$0xff]
      %v295 = vld [vmem:[%s198 + $0x26c] sm:$0xf]
      %v296 = vld [vmem:[%s198 + $0x270] sm:$0xff]
      %v297 = vld [vmem:[%s198 + $0x278] sm:$0xff]
      %v298 = vld [vmem:[%s198 + $0x280] sm:$0xff]
      %v299 = vld [vmem:[%s198 + $0x288] sm:$0xff]
      %v300 = vld [vmem:[%s198 + $0x290] sm:$0xff]
      %v301 = vld [vmem:[%s198 + $0x298] sm:$0xff]
      %v302 = vld [vmem:[%s198 + $0x2a0] sm:$0xf]
      %v303 = vld [vmem:[%s198 + $0x2a4] sm:$0x33]
      %v304 = vld [vmem:[%s198 + $0x2ac] sm:$0x33]
      %v305 = vld [vmem:[%s198 + $0x2b4] sm:$0x33]
      %v306 = vld [vmem:[%s198 + $0x2bc] sm:$0x33]
      %v307 = vld [vmem:[%s198 + $0x2c4] sm:$0x33]
      %v308 = vld [vmem:[%s198 + $0x2cc] sm:$0x33]
      %v309 = vld [vmem:[%s198 + $0x2d4] sm:$0x3]
      %v310 = vld [vmem:[%s2] sm:$0xff]
      %312 = vset.pattern.permute.xlu0 0
      %313 = vperm.xlu0 %312, %v310
      %v314 = vpop.permute.xlu0 %313
      %v414 = vunpack.c.l.b16 %v212
      %v415 = vunpack.c.h.b16 %v212
      %v416 = vunpack.c.l.b16 %v213
      %v417 = vunpack.c.h.b16 %v213
      %v418 = vunpack.c.l.b16 %v214
      %v419 = vunpack.c.h.b16 %v214
      %v420 = vunpack.c.l.b16 %v215
      %v421 = vunpack.c.h.b16 %v215
      %v422 = vunpack.c.l.b16 %v216
      %v423 = vunpack.c.h.b16 %v216
      %v424 = vunpack.c.l.b16 %v217
      %v425 = vunpack.c.h.b16 %v217
      %v426 = vunpack.c.l.b16 %v218
      %v427 = vunpack.c.l.b16 %v219
      %v428 = vunpack.c.h.b16 %v219
      %v429 = vunpack.c.l.b16 %v220
      %v430 = vunpack.c.h.b16 %v220
      %v431 = vunpack.c.l.b16 %v221
      %v432 = vunpack.c.h.b16 %v221
      %v433 = vunpack.c.l.b16 %v222
      %v434 = vunpack.c.h.b16 %v222
      %v435 = vunpack.c.l.b16 %v223
      %v436 = vunpack.c.h.b16 %v223
      %v437 = vunpack.c.l.b16 %v224
      %v438 = vunpack.c.h.b16 %v224
      %v439 = vunpack.c.l.b16 %v225
      %v440 = vunpack.c.l.b16 %v226
      %v441 = vunpack.c.h.b16 %v226
      %v442 = vunpack.c.l.b16 %v227
      %v443 = vunpack.c.h.b16 %v227
      %v444 = vunpack.c.l.b16 %v228
      %v445 = vunpack.c.h.b16 %v228
      %v446 = vunpack.c.l.b16 %v229
      %v447 = vunpack.c.h.b16 %v229
      %v448 = vunpack.c.l.b16 %v230
      %v449 = vunpack.c.h.b16 %v230
      %v450 = vunpack.c.l.b16 %v231
      %v451 = vunpack.c.h.b16 %v231
      %v452 = vunpack.c.l.b16 %v232
      %v453 = vunpack.c.l.b16 %v233
      %v454 = vunpack.c.h.b16 %v233
      %v455 = vunpack.c.l.b16 %v234
      %v456 = vunpack.c.h.b16 %v234
      %v457 = vunpack.c.l.b16 %v235
      %v458 = vunpack.c.h.b16 %v235
      %v459 = vunpack.c.l.b16 %v236
      %v460 = vunpack.c.h.b16 %v236
      %v461 = vunpack.c.l.b16 %v237
      %v462 = vunpack.c.h.b16 %v237
      %v463 = vunpack.c.l.b16 %v238
      %v464 = vunpack.c.h.b16 %v238
      %v465 = vunpack.c.l.b16 %v239
      %v466 = vunpack.c.l.b16 %v240
      %v467 = vunpack.c.h.b16 %v240
      %v468 = vunpack.c.l.b16 %v241
      %v469 = vunpack.c.h.b16 %v241
      %v470 = vunpack.c.l.b16 %v242
      %v471 = vunpack.c.h.b16 %v242
      %v472 = vunpack.c.l.b16 %v243
      %v473 = vunpack.c.h.b16 %v243
      %v474 = vunpack.c.l.b16 %v244
      %v475 = vunpack.c.h.b16 %v244
      %v476 = vunpack.c.l.b16 %v245
      %v477 = vunpack.c.h.b16 %v245
      %v478 = vunpack.c.l.b16 %v246
      %v479 = vunpack.c.l.b16 %v247
      %v480 = vunpack.c.h.b16 %v247
      %v481 = vunpack.c.l.b16 %v248
      %v482 = vunpack.c.h.b16 %v248
      %v483 = vunpack.c.l.b16 %v249
      %v484 = vunpack.c.h.b16 %v249
      %v485 = vunpack.c.l.b16 %v250
      %v486 = vunpack.c.h.b16 %v250
      %v487 = vunpack.c.l.b16 %v251
      %v488 = vunpack.c.h.b16 %v251
      %v489 = vunpack.c.l.b16 %v252
      %v490 = vunpack.c.h.b16 %v252
      %v491 = vunpack.c.l.b16 %v253
      %v492 = vunpack.c.l.b16 %v254
      %v493 = vunpack.c.h.b16 %v254
      %v494 = vunpack.c.l.b16 %v255
      %v495 = vunpack.c.h.b16 %v255
      %v496 = vunpack.c.l.b16 %v256
      %v497 = vunpack.c.h.b16 %v256
      %v498 = vunpack.c.l.b16 %v257
      %v499 = vunpack.c.h.b16 %v257
      %v500 = vunpack.c.l.b16 %v258
      %v501 = vunpack.c.h.b16 %v258
      %v502 = vunpack.c.l.b16 %v259
      %v503 = vunpack.c.h.b16 %v259
      %v504 = vunpack.c.l.b16 %v260
      %v505 = vunpack.c.l.b16 %v261
      %v506 = vunpack.c.h.b16 %v261
      %v507 = vunpack.c.l.b16 %v262
      %v508 = vunpack.c.h.b16 %v262
      %v509 = vunpack.c.l.b16 %v263
      %v510 = vunpack.c.h.b16 %v263
      %v511 = vunpack.c.l.b16 %v264
      %v512 = vunpack.c.h.b16 %v264
      %v513 = vunpack.c.l.b16 %v265
      %v514 = vunpack.c.h.b16 %v265
      %v515 = vunpack.c.l.b16 %v266
      %v516 = vunpack.c.h.b16 %v266
      %v517 = vunpack.c.l.b16 %v267
      %v518 = vunpack.c.l.b16 %v268
      %v519 = vunpack.c.h.b16 %v268
      %v520 = vunpack.c.l.b16 %v269
      %v521 = vunpack.c.h.b16 %v269
      %v522 = vunpack.c.l.b16 %v270
      %v523 = vunpack.c.h.b16 %v270
      %v524 = vunpack.c.l.b16 %v271
      %v525 = vunpack.c.h.b16 %v271
      %v526 = vunpack.c.l.b16 %v272
      %v527 = vunpack.c.h.b16 %v272
      %v528 = vunpack.c.l.b16 %v273
      %v529 = vunpack.c.h.b16 %v273
      %v530 = vunpack.c.l.b16 %v274
      %v531 = vunpack.c.l.b16 %v275
      %v532 = vunpack.c.h.b16 %v275
      %v533 = vunpack.c.l.b16 %v276
      %v534 = vunpack.c.h.b16 %v276
      %v535 = vunpack.c.l.b16 %v277
      %v536 = vunpack.c.h.b16 %v277
      %v537 = vunpack.c.l.b16 %v278
      %v538 = vunpack.c.h.b16 %v278
      %v539 = vunpack.c.l.b16 %v279
      %v540 = vunpack.c.h.b16 %v279
      %v541 = vunpack.c.l.b16 %v280
      %v542 = vunpack.c.h.b16 %v280
      %v543 = vunpack.c.l.b16 %v281
      %v544 = vunpack.c.l.b16 %v282
      %v545 = vunpack.c.h.b16 %v282
      %v546 = vunpack.c.l.b16 %v283
      %v547 = vunpack.c.h.b16 %v283
      %v548 = vunpack.c.l.b16 %v284
      %v549 = vunpack.c.h.b16 %v284
      %v550 = vunpack.c.l.b16 %v285
      %v551 = vunpack.c.h.b16 %v285
      %v552 = vunpack.c.l.b16 %v286
      %v553 = vunpack.c.h.b16 %v286
      %v554 = vunpack.c.l.b16 %v287
      %v555 = vunpack.c.h.b16 %v287
      %v556 = vunpack.c.l.b16 %v288
      %v557 = vunpack.c.l.b16 %v289
      %v558 = vunpack.c.h.b16 %v289
      %v559 = vunpack.c.l.b16 %v290
      %v560 = vunpack.c.h.b16 %v290
      %v561 = vunpack.c.l.b16 %v291
      %v562 = vunpack.c.h.b16 %v291
      %v563 = vunpack.c.l.b16 %v292
      %v564 = vunpack.c.h.b16 %v292
      %v565 = vunpack.c.l.b16 %v293
      %v566 = vunpack.c.h.b16 %v293
      %v567 = vunpack.c.l.b16 %v294
      %v568 = vunpack.c.h.b16 %v294
      %v569 = vunpack.c.l.b16 %v295
      %v570 = vunpack.c.l.b16 %v296
      %v571 = vunpack.c.h.b16 %v296
      %v572 = vunpack.c.l.b16 %v297
      %v573 = vunpack.c.h.b16 %v297
      %v574 = vunpack.c.l.b16 %v298
      %v575 = vunpack.c.h.b16 %v298
      %v576 = vunpack.c.l.b16 %v299
      %v577 = vunpack.c.h.b16 %v299
      %v578 = vunpack.c.l.b16 %v300
      %v579 = vunpack.c.h.b16 %v300
      %v580 = vunpack.c.l.b16 %v301
      %v581 = vunpack.c.h.b16 %v301
      %v582 = vunpack.c.l.b16 %v302
      %v583 = vunpack.c.l.b16 %v303
      %v584 = vunpack.c.h.b16 %v303
      %v585 = vunpack.c.l.b16 %v304
      %v586 = vunpack.c.h.b16 %v304
      %v587 = vunpack.c.l.b16 %v305
      %v588 = vunpack.c.h.b16 %v305
      %v589 = vunpack.c.l.b16 %v306
      %v590 = vunpack.c.h.b16 %v306
      %v591 = vunpack.c.l.b16 %v307
      %v592 = vunpack.c.h.b16 %v307
      %v593 = vunpack.c.l.b16 %v308
      %v594 = vunpack.c.h.b16 %v308
      %v595 = vunpack.c.l.b16 %v309
      %v596 = vpack.c.b16 %v427, %v414
      %v597 = vpack.c.b16 %v428, %v415
      %v598 = vpack.c.b16 %v429, %v416
      %v599 = vpack.c.b16 %v430, %v417
      %v600 = vpack.c.b16 %v431, %v418
      %v601 = vpack.c.b16 %v432, %v419
      %v602 = vpack.c.b16 %v433, %v420
      %v603 = vpack.c.b16 %v434, %v421
      %v604 = vpack.c.b16 %v435, %v422
      %v605 = vpack.c.b16 %v436, %v423
      %v606 = vpack.c.b16 %v437, %v424
      %v607 = vpack.c.b16 %v438, %v425
      %v608 = vpack.c.b16 %v439, %v426
      %v609 = vpack.c.b16 %v453, %v440
      %v610 = vpack.c.b16 %v454, %v441
      %v611 = vpack.c.b16 %v455, %v442
      %v612 = vpack.c.b16 %v456, %v443
      %v613 = vpack.c.b16 %v457, %v444
      %v614 = vpack.c.b16 %v458, %v445
      %v615 = vpack.c.b16 %v459, %v446
      %v616 = vpack.c.b16 %v460, %v447
      %v617 = vpack.c.b16 %v461, %v448
      %v618 = vpack.c.b16 %v462, %v449
      %v619 = vpack.c.b16 %v463, %v450
      %v620 = vpack.c.b16 %v464, %v451
      %v621 = vpack.c.b16 %v465, %v452
      %v622 = vpack.c.b16 %v479, %v466
      %v623 = vpack.c.b16 %v480, %v467
      %v624 = vpack.c.b16 %v481, %v468
      %v625 = vpack.c.b16 %v482, %v469
      %v626 = vpack.c.b16 %v483, %v470
      %v627 = vpack.c.b16 %v484, %v471
      %v628 = vpack.c.b16 %v485, %v472
      %v629 = vpack.c.b16 %v486, %v473
      %v630 = vpack.c.b16 %v487, %v474
      %v631 = vpack.c.b16 %v488, %v475
      %v632 = vpack.c.b16 %v489, %v476
      %v633 = vpack.c.b16 %v490, %v477
      %v634 = vpack.c.b16 %v491, %v478
      %v635 = vpack.c.b16 %v505, %v492
      %v636 = vpack.c.b16 %v506, %v493
      %v637 = vpack.c.b16 %v507, %v494
      %v638 = vpack.c.b16 %v508, %v495
      %v639 = vpack.c.b16 %v509, %v496
      %v640 = vpack.c.b16 %v510, %v497
      %v641 = vpack.c.b16 %v511, %v498
      %v642 = vpack.c.b16 %v512, %v499
      %v643 = vpack.c.b16 %v513, %v500
      %v644 = vpack.c.b16 %v514, %v501
      %v645 = vpack.c.b16 %v515, %v502
      %v646 = vpack.c.b16 %v516, %v503
      %v647 = vpack.c.b16 %v517, %v504
      %v648 = vpack.c.b16 %v531, %v518
      %v649 = vpack.c.b16 %v532, %v519
      %v650 = vpack.c.b16 %v533, %v520
      %v651 = vpack.c.b16 %v534, %v521
      %v652 = vpack.c.b16 %v535, %v522
      %v653 = vpack.c.b16 %v536, %v523
      %v654 = vpack.c.b16 %v537, %v524
      %v655 = vpack.c.b16 %v538, %v525
      %v656 = vpack.c.b16 %v539, %v526
      %v657 = vpack.c.b16 %v540, %v527
      %v658 = vpack.c.b16 %v541, %v528
      %v659 = vpack.c.b16 %v542, %v529
      %v660 = vpack.c.b16 %v543, %v530
      %v661 = vpack.c.b16 %v557, %v544
      %v662 = vpack.c.b16 %v558, %v545
      %v663 = vpack.c.b16 %v559, %v546
      %v664 = vpack.c.b16 %v560, %v547
      %v665 = vpack.c.b16 %v561, %v548
      %v666 = vpack.c.b16 %v562, %v549
      %v667 = vpack.c.b16 %v563, %v550
      %v668 = vpack.c.b16 %v564, %v551
      %v669 = vpack.c.b16 %v565, %v552
      %v670 = vpack.c.b16 %v566, %v553
      %v671 = vpack.c.b16 %v567, %v554
      %v672 = vpack.c.b16 %v568, %v555
      %v673 = vpack.c.b16 %v569, %v556
      %v674 = vpack.c.b16 %v583, %v570
      %v675 = vpack.c.b16 %v584, %v571
      %v676 = vpack.c.b16 %v585, %v572
      %v677 = vpack.c.b16 %v586, %v573
      %v678 = vpack.c.b16 %v587, %v574
      %v679 = vpack.c.b16 %v588, %v575
      %v680 = vpack.c.b16 %v589, %v576
      %v681 = vpack.c.b16 %v590, %v577
      %v682 = vpack.c.b16 %v591, %v578
      %v683 = vpack.c.b16 %v592, %v579
      %v684 = vpack.c.b16 %v593, %v580
      %v685 = vpack.c.b16 %v594, %v581
      %v686 = vpack.c.b16 %v595, %v582
      %vm765 = vcmask 883712
      %v767 = vsel %vm765, %v211, 0
      %vm769 = vcmask 1045504
      %v771 = vsel %vm769, %v674, 0
      %v774 = vsel %vm769, %v675, 0
      %v777 = vsel %vm769, %v676, 0
      %v780 = vsel %vm769, %v677, 0
      %v783 = vsel %vm769, %v678, 0
      %v786 = vsel %vm769, %v679, 0
      %v789 = vsel %vm769, %v680, 0
      %v792 = vsel %vm769, %v681, 0
      %v795 = vsel %vm769, %v682, 0
      %v798 = vsel %vm769, %v683, 0
      %v801 = vsel %vm769, %v684, 0
      %v804 = vsel %vm769, %v685, 0
      %v807 = vsel %vm769, %v686, 0
      %809 = vmatpush.bf16.msra.mxu0 0
      %810 = vmatpush.bf16.msra.mxu0 %v771
      %811 = vmatpush.bf16.msra.mxu0 %v661
      %812 = vmatpush.bf16.msra.mxu0 %v648
      %813 = vmatpush.bf16.msra.mxu0 %v635
      %814 = vmatpush.bf16.msra.mxu0 %v622
      %815 = vmatpush.bf16.msra.mxu0 %v609
      %816 = vmatpush.bf16.msra.mxu0 %v596
      %817 = vmatmul.bf16.gmra.mxu0 %v767
      %v818 = vpop.f32.mrf.mxu0
      %v819 = vadd.f32 %v314, %v818
      %v820 = vpop.f32.mrf.mxu0
      %821 = vdwg.mxu0
      %822 = vmatpush.bf16.msra.mxu0 0
      %823 = vmatpush.bf16.msra.mxu0 %v774
      %824 = vmatpush.bf16.msra.mxu0 %v662
      %825 = vmatpush.bf16.msra.mxu0 %v649
      %826 = vmatpush.bf16.msra.mxu0 %v636
      %827 = vmatpush.bf16.msra.mxu0 %v623
      %828 = vmatpush.bf16.msra.mxu0 %v610
      %829 = vmatpush.bf16.msra.mxu0 %v597
      %830 = vmatmul.bf16.gmra.mxu0 %v767
      %v831 = vpop.f32.mrf.mxu0
      %v832 = vadd.f32 %v314, %v831
      %v833 = vpop.f32.mrf.mxu0
      %834 = vdwg.mxu0
      %835 = vmatpush.bf16.msra.mxu0 0
      %836 = vmatpush.bf16.msra.mxu0 %v777
      %837 = vmatpush.bf16.msra.mxu0 %v663
      %838 = vmatpush.bf16.msra.mxu0 %v650
      %839 = vmatpush.bf16.msra.mxu0 %v637
      %840 = vmatpush.bf16.msra.mxu0 %v624
      %841 = vmatpush.bf16.msra.mxu0 %v611
      %842 = vmatpush.bf16.msra.mxu0 %v598
      %843 = vmatmul.bf16.gmra.mxu0 %v767
      %v844 = vpop.f32.mrf.mxu0
      %v845 = vadd.f32 %v314, %v844
      %v846 = vpop.f32.mrf.mxu0
      %847 = vdwg.mxu0
      %848 = vmatpush.bf16.msra.mxu0 0
      %849 = vmatpush.bf16.msra.mxu0 %v780
      %850 = vmatpush.bf16.msra.mxu0 %v664
      %851 = vmatpush.bf16.msra.mxu0 %v651
      %852 = vmatpush.bf16.msra.mxu0 %v638
      %853 = vmatpush.bf16.msra.mxu0 %v625
      %854 = vmatpush.bf16.msra.mxu0 %v612
      %855 = vmatpush.bf16.msra.mxu0 %v599
      %856 = vmatmul.bf16.gmra.mxu0 %v767
      %v857 = vpop.f32.mrf.mxu0
      %v858 = vadd.f32 %v314, %v857
      %v859 = vpop.f32.mrf.mxu0
      %860 = vdwg.mxu0
      %861 = vmatpush.bf16.msra.mxu0 0
      %862 = vmatpush.bf16.msra.mxu0 %v783
      %863 = vmatpush.bf16.msra.mxu0 %v665
      %864 = vmatpush.bf16.msra.mxu0 %v652
      %865 = vmatpush.bf16.msra.mxu0 %v639
      %866 = vmatpush.bf16.msra.mxu0 %v626
      %867 = vmatpush.bf16.msra.mxu0 %v613
      %868 = vmatpush.bf16.msra.mxu0 %v600
      %869 = vmatmul.bf16.gmra.mxu0 %v767
      %v870 = vpop.f32.mrf.mxu0
      %v871 = vadd.f32 %v314, %v870
      %v872 = vpop.f32.mrf.mxu0
      %873 = vdwg.mxu0
      %874 = vmatpush.bf16.msra.mxu0 0
      %875 = vmatpush.bf16.msra.mxu0 %v786
      %876 = vmatpush.bf16.msra.mxu0 %v666
      %877 = vmatpush.bf16.msra.mxu0 %v653
      %878 = vmatpush.bf16.msra.mxu0 %v640
      %879 = vmatpush.bf16.msra.mxu0 %v627
      %880 = vmatpush.bf16.msra.mxu0 %v614
      %881 = vmatpush.bf16.msra.mxu0 %v601
      %882 = vmatmul.bf16.gmra.mxu0 %v767
      %v883 = vpop.f32.mrf.mxu0
      %v884 = vadd.f32 %v314, %v883
      %v885 = vpop.f32.mrf.mxu0
      %886 = vdwg.mxu0
      %887 = vmatpush.bf16.msra.mxu0 0
      %888 = vmatpush.bf16.msra.mxu0 %v789
      %889 = vmatpush.bf16.msra.mxu0 %v667
      %890 = vmatpush.bf16.msra.mxu0 %v654
      %891 = vmatpush.bf16.msra.mxu0 %v641
      %892 = vmatpush.bf16.msra.mxu0 %v628
      %893 = vmatpush.bf16.msra.mxu0 %v615
      %894 = vmatpush.bf16.msra.mxu0 %v602
      %895 = vmatmul.bf16.gmra.mxu0 %v767
      %v896 = vpop.f32.mrf.mxu0
      %v897 = vadd.f32 %v314, %v896
      %v898 = vpop.f32.mrf.mxu0
      %899 = vdwg.mxu0
      %900 = vmatpush.bf16.msra.mxu0 0
      %901 = vmatpush.bf16.msra.mxu0 %v792
      %902 = vmatpush.bf16.msra.mxu0 %v668
      %903 = vmatpush.bf16.msra.mxu0 %v655
      %904 = vmatpush.bf16.msra.mxu0 %v642
      %905 = vmatpush.bf16.msra.mxu0 %v629
      %906 = vmatpush.bf16.msra.mxu0 %v616
      %907 = vmatpush.bf16.msra.mxu0 %v603
      %908 = vmatmul.bf16.gmra.mxu0 %v767
      %v909 = vpop.f32.mrf.mxu0
      %v910 = vadd.f32 %v314, %v909
      %v911 = vpop.f32.mrf.mxu0
      %912 = vdwg.mxu0
      %913 = vmatpush.bf16.msra.mxu0 0
      %914 = vmatpush.bf16.msra.mxu0 %v795
      %915 = vmatpush.bf16.msra.mxu0 %v669
      %916 = vmatpush.bf16.msra.mxu0 %v656
      %917 = vmatpush.bf16.msra.mxu0 %v643
      %918 = vmatpush.bf16.msra.mxu0 %v630
      %919 = vmatpush.bf16.msra.mxu0 %v617
      %920 = vmatpush.bf16.msra.mxu0 %v604
      %921 = vmatmul.bf16.gmra.mxu0 %v767
      %v922 = vpop.f32.mrf.mxu0
      %v923 = vadd.f32 %v314, %v922
      %v924 = vpop.f32.mrf.mxu0
      %925 = vdwg.mxu0
      %926 = vmatpush.bf16.msra.mxu0 0
      %927 = vmatpush.bf16.msra.mxu0 %v798
      %928 = vmatpush.bf16.msra.mxu0 %v670
      %929 = vmatpush.bf16.msra.mxu0 %v657
      %930 = vmatpush.bf16.msra.mxu0 %v644
      %931 = vmatpush.bf16.msra.mxu0 %v631
      %932 = vmatpush.bf16.msra.mxu0 %v618
      %933 = vmatpush.bf16.msra.mxu0 %v605
      %934 = vmatmul.bf16.gmra.mxu0 %v767
      %v935 = vpop.f32.mrf.mxu0
      %v936 = vadd.f32 %v314, %v935
      %v937 = vpop.f32.mrf.mxu0
      %938 = vdwg.mxu0
      %939 = vmatpush.bf16.msra.mxu0 0
      %940 = vmatpush.bf16.msra.mxu0 %v801
      %941 = vmatpush.bf16.msra.mxu0 %v671
      %942 = vmatpush.bf16.msra.mxu0 %v658
      %943 = vmatpush.bf16.msra.mxu0 %v645
      %944 = vmatpush.bf16.msra.mxu0 %v632
      %945 = vmatpush.bf16.msra.mxu0 %v619
      %946 = vmatpush.bf16.msra.mxu0 %v606
      %947 = vmatmul.bf16.gmra.mxu0 %v767
      %v948 = vpop.f32.mrf.mxu0
      %v949 = vadd.f32 %v314, %v948
      %v950 = vpop.f32.mrf.mxu0
      %951 = vdwg.mxu0
      %952 = vmatpush.bf16.msra.mxu0 0
      %953 = vmatpush.bf16.msra.mxu0 %v804
      %954 = vmatpush.bf16.msra.mxu0 %v672
      %955 = vmatpush.bf16.msra.mxu0 %v659
      %956 = vmatpush.bf16.msra.mxu0 %v646
      %957 = vmatpush.bf16.msra.mxu0 %v633
      %958 = vmatpush.bf16.msra.mxu0 %v620
      %959 = vmatpush.bf16.msra.mxu0 %v607
      %960 = vmatmul.bf16.gmra.mxu0 %v767
      %v961 = vpop.f32.mrf.mxu0
      %v962 = vadd.f32 %v314, %v961
      %v963 = vpop.f32.mrf.mxu0
      %964 = vdwg.mxu0
      %965 = vmatpush.bf16.msra.mxu0 0
      %966 = vmatpush.bf16.msra.mxu0 %v807
      %967 = vmatpush.bf16.msra.mxu0 %v673
      %968 = vmatpush.bf16.msra.mxu0 %v660
      %969 = vmatpush.bf16.msra.mxu0 %v647
      %970 = vmatpush.bf16.msra.mxu0 %v634
      %971 = vmatpush.bf16.msra.mxu0 %v621
      %972 = vmatpush.bf16.msra.mxu0 %v608
      %973 = vmatmul.bf16.gmra.mxu0 %v767
      %v974 = vpop.f32.mrf.mxu0
      %v975 = vadd.f32 %v314, %v974
      %v976 = vpop.f32.mrf.mxu0
      %977 = vdwg.mxu0
      %978 = vst [vmem:[%s208] sm:$0xff] %v819
      %979 = vst [vmem:[%s208 + $0x8] sm:$0xff] %v832
      %980 = vst [vmem:[%s208 + $0x10] sm:$0xff] %v845
      %981 = vst [vmem:[%s208 + $0x18] sm:$0xff] %v858
      %982 = vst [vmem:[%s208 + $0x20] sm:$0xff] %v871
      %983 = vst [vmem:[%s208 + $0x28] sm:$0xff] %v884
      %984 = vst [vmem:[%s208 + $0x30] sm:$0xff] %v897
      %985 = vst [vmem:[%s208 + $0x38] sm:$0xff] %v910
      %986 = vst [vmem:[%s208 + $0x40] sm:$0xff] %v923
      %987 = vst [vmem:[%s208 + $0x48] sm:$0xff] %v936
      %988 = vst [vmem:[%s208 + $0x50] sm:$0xff] %v949
      %989 = vst [vmem:[%s208 + $0x58] sm:$0xff] %v962
      %990 = vst [vmem:[%s208 + $0x60] sm:$0xff] %v975
      %s991 = smul.u32 13, %s19
      %p992 = scmp.lt.s32.totalorder %s18, 1
      %s993 = scalar_select %p992, %s18, 1
      %p994 = scmp.lt.s32.totalorder %s991, 12
      %s995 = scalar_select %p994, %s991, 12
      %s996 = smul.addr %s993, 13
      %s997 = sadd.s32 %s995, %s996
      %s998 = smul.addr %s997, 8
      %s999 = scalar_lea.vmem %s3, %s998
      // Predicated region
      $region33: #{caus_conv3d.1} parent=31 // pred_check
        %p1000 = pneg %p116
      $region34: #{caus_conv3d.1} parent=31 // pred_check_branch
        %1002 = sbr.rel (%p1000) target = $region36
      $region35: #{caus_conv3d.1} parent=31 // pred_region
        %s1003 = smul.u32 13, %s19
      $region36: #{caus_conv3d.1} parent=31 // pred_fallthru
        _
    $region32: #{caus_conv3d.1} parent=5 // pred_fallthru
      _
    %p1004 = scmp.le.s32.totalorder 2, %s9
    // Predicated region
    $region37: #{caus_conv3d.1} parent=5 // pred_check
      %p1005 = pneg %p1004
    $region38: #{caus_conv3d.1} parent=5 // pred_check_branch
      %1007 = sbr.rel (%p1005) target = $region40
    $region39: #{caus_conv3d.1} parent=5 // pred_region
      %s1008 = ssub.s32 %s9, 2
      // Predicated region
      $region41: #{caus_conv3d.1} parent=39 // pred_check
        %p1009 = pneg %p122
      $region42: #{caus_conv3d.1} parent=39 // pred_check_branch
        %1011 = sbr.rel (%p1009) target = $region44
      $region43: #{caus_conv3d.1} parent=39 // pred_region
        %s1012 = smul.u32 13, %s21
        %p1013 = scmp.lt.s32.totalorder %s20, 1
        %s1014 = scalar_select %p1013, %s20, 1
        %p1015 = scmp.lt.s32.totalorder %s1012, 12
        %s1016 = scalar_select %p1015, %s1012, 12
        %s1017 = smul.addr %s1014, 13
        %s1018 = sadd.s32 %s1016, %s1017
        %s1019 = smul.addr %s1018, 8
        %s1020 = scalar_lea.vmem %s3, %s1019
      $region44: #{caus_conv3d.1} parent=39 // pred_fallthru
        _
    $region40: #{caus_conv3d.1} parent=5 // pred_fallthru
      _
  $region6: #{caus_conv3d.1} parent=0 // loop_footer
    %s13 = sadd.s32 1, %s9
  $region7: #{caus_conv3d.1} parent=0 // loop_footer_branch
    %8 = sbr.rel target = $region3
  $region8: #{caus_conv3d.1} parent=0 // loop_exit
    _

</llo_original>
